<compile_context>
chip_gen: v5e
topology: v5e:2x2
jax: 0.10.0
libtpu: 0.0.40
codegen_flags: <defaults>
</compile_context>

<pallas_src>
import math

import jax
import jax.numpy as jnp
from jax.experimental import pallas as pl
from jax.experimental.pallas import tpu as pltpu


def make_att_kernel(batch_block, seq_len, num_heads, key_size, model_dim,
                    out_dim_padded):
    Bb, T, H, K, D, Dp = (batch_block, seq_len, num_heads, key_size,
                          model_dim, out_dim_padded)
    HK = H * K
    rows = Bb * T
    bf16, f32 = jnp.bfloat16, jnp.float32

    def att_kernel(x_ref, wqkv_ref, bqkv_ref, wo_ref, bo_ref, o_ref):
        xs = x_ref[...]                                      # (rows, D) f32

        # Fused Q/K/V projection: one MXU matmul over the whole (Bb*T, D)
        # slab; 1/sqrt(K) is already folded into the Q columns of wqkv/bqkv.
        qkv = jnp.dot(xs.astype(bf16), wqkv_ref[...],
                      preferred_element_type=f32) + bqkv_ref[...]  # (rows, 3*HK)

        # Static lane slices + leading-dim reshapes only (lane dim unchanged).
        q_all = qkv[:, 0:HK].reshape(Bb, T, HK).astype(bf16)
        k_all = qkv[:, HK:2 * HK].reshape(Bb, T, HK).astype(bf16)
        v_all = qkv[:, 2 * HK:3 * HK].reshape(Bb, T, HK).astype(bf16)

        # Per-head attention (H is tiny and static); the batch dimension is a
        # dot_general batch dim, so there is no Python loop over batch.
        head_out = []
        for h in range(H):
            lo, hi = h * K, (h + 1) * K
            q_h = q_all[:, :, lo:hi]                         # (Bb, T, K) bf16
            k_h = k_all[:, :, lo:hi]
            v_h = v_all[:, :, lo:hi]

            logits = jnp.einsum('btk,bsk->bts', q_h, k_h,
                                preferred_element_type=f32)  # (Bb, T, T) f32

            m = jnp.max(logits, axis=-1, keepdims=True)
            e = jnp.exp(logits - m)
            p = e * pl.reciprocal(jnp.sum(e, axis=-1, keepdims=True),
                                  approx=True)

            attn_h = jnp.einsum('bts,bsk->btk', p.astype(bf16), v_h,
                                preferred_element_type=f32)  # (Bb, T, K) f32
            head_out.append(attn_h)

        # Lane-concat heads -> (Bb, T, HK), flatten batch/time, and do ONE
        # output-projection matmul against the (HK, Dp) lane-padded Wo.
        attn = jnp.concatenate(head_out, axis=-1).reshape(rows, HK)
        out = jnp.dot(attn.astype(bf16), wo_ref[...],
                      preferred_element_type=f32) + bo_ref[...]    # (rows, Dp)

        # Residual add in f32.  Lanes [D:Dp) of `out` are exactly zero (padded
        # Wo columns / bo), so padding xs with zeros keeps the store a full
        # unmasked (rows, Dp) slab; the wrapper slices the padding off.
        if Dp > D:
            xs_res = jnp.concatenate(
                [xs, jnp.zeros((rows, Dp - D), f32)], axis=-1)
        else:
            xs_res = xs
        o_ref[...] = xs_res + out

    return att_kernel


def _pick_batch_block(batch, seq, heads, kdim, dim):
    """Batch elements per grid step.

    The grid is a sequential loop (sharded across TensorCores only on v7x) and
    each step costs ~0.35us, so default to a single step; only split the batch
    in two when a half-batch step still carries ~1us of MXU work and the block
    stays sublane-aligned.
    """
    flops_per_elem = (2 * seq * dim * 3 * heads * kdim      # fused QKV
                      + 2 * heads * seq * seq * kdim * 2    # logits + PV
                      + 2 * seq * heads * kdim * dim)       # output proj
    half = batch // 2
    if (batch % 2 == 0 and half > 0 and (half * seq) % 8 == 0
            and half * flops_per_elem >= 2_000_000):
        return half
    return batch


def prepare_att_params(params, num_heads, key_size):
    """One-time, per-parameter-set packing (hoisted out of the call path).

    Fuses Wq/Wk/Wv (and biases) into a single (D, 3*H*K) bf16 slab with the
    1/sqrt(K) scale folded into the Q portion, and zero-pads Wo columns / bo
    to a 128-lane multiple so the kernel's output store is lane-dense.
    Weights in math orientation W[in, out] (as in the PyTorch module).
    """
    f32, bf16 = jnp.float32, jnp.bfloat16
    scale = 1.0 / math.sqrt(float(key_size))

    wq = jnp.asarray(params["wq"], f32) * scale
    bq = jnp.asarray(params["bq"], f32) * scale
    wk = jnp.asarray(params["wk"], f32)
    bk = jnp.asarray(params["bk"], f32)
    wv = jnp.asarray(params["wv"], f32)
    bv = jnp.asarray(params["bv"], f32)

    wqkv = jnp.concatenate([wq, wk, wv], axis=1).astype(bf16)        # (D, 3HK)
    bqkv = jnp.concatenate([bq, bk, bv]).reshape(1, -1).astype(f32)  # (1, 3HK)

    wo = jnp.asarray(params["wo"], f32)                              # (HK, D)
    bo = jnp.asarray(params["bo"], f32)                              # (D,)
    d_out = wo.shape[1]
    d_pad = ((d_out + 127) // 128) * 128
    if d_pad > d_out:
        wo = jnp.pad(wo, ((0, 0), (0, d_pad - d_out)))
        bo = jnp.pad(bo, (0, d_pad - d_out))

    return {
        "wqkv": wqkv,                                 # (D, 3*H*K)   bf16
        "bqkv": bqkv,                                 # (1, 3*H*K)   f32
        "wo": wo.astype(bf16),                        # (H*K, d_pad) bf16
        "bo": bo.reshape(1, d_pad).astype(f32),       # (1, d_pad)   f32
    }


def att_forward(x, packed, num_heads, key_size, batch_block=None):
    """x: (B, T, D) float32.  packed: output of prepare_att_params."""
    B, T, D = x.shape
    H, K = num_heads, key_size
    HK = H * K
    assert D == HK, "residual x + out requires model_dim == num_heads * key_size"
    Dp = packed["wo"].shape[1]

    if batch_block is None:
        batch_block = _pick_batch_block(B, T, H, K, D)
    Bb = batch_block
    assert B % Bb == 0
    rows_blk = Bb * T

    xs = x.reshape(B * T, D).astype(jnp.float32)
    kernel = make_att_kernel(Bb, T, H, K, D, Dp)

    def const_spec(arr):
        # Constant-index blocks: weights/biases stay resident across steps.
        return pl.BlockSpec(arr.shape, lambda i: (0,) * arr.ndim)

    out = pl.pallas_call(
        kernel,
        out_shape=jax.ShapeDtypeStruct((B * T, Dp), jnp.float32),
        grid=(B // Bb,),
        in_specs=[
            pl.BlockSpec((rows_blk, D), lambda i: (i, 0)),   # x slab
            const_spec(packed["wqkv"]),
            const_spec(packed["bqkv"]),
            const_spec(packed["wo"]),
            const_spec(packed["bo"]),
        ],
        out_specs=pl.BlockSpec((rows_blk, Dp), lambda i: (i, 0)),
        compiler_params=pltpu.CompilerParams(
            dimension_semantics=("parallel",)),
    )(xs, packed["wqkv"], packed["bqkv"], packed["wo"], packed["bo"])

    if Dp > D:
        out = out[:, :D]
    return out.reshape(B, T, D)


def att_reference(x, params, num_heads, key_size):
    """Pure-JAX f32 reference mirroring the PyTorch forward."""
    B, T, D = x.shape
    q = (x @ params["wq"] + params["bq"]).reshape(B, T, num_heads, key_size)
    k = (x @ params["wk"] + params["bk"]).reshape(B, T, num_heads, key_size)
    v = (x @ params["wv"] + params["bv"]).reshape(B, T, num_heads, key_size)
    logits = jnp.einsum("bthd,bshd->bhts", q, k) / jnp.sqrt(jnp.float32(key_size))
    w = jax.nn.softmax(logits, axis=-1)
    attn = jnp.einsum("bhts,bshd->bthd", w, v).reshape(B, T, num_heads * key_size)
    out = attn @ params["wo"] + params["bo"]
    return x + out


if __name__ == "__main__":
    # Small shapes consistent with the module: model dim D = num_heads * key_size
    # so the residual (x + out) is well-defined.
    B, T = 2, 8
    num_heads, key_size = 4, 8
    D = num_heads * key_size          # 32
    HK = num_heads * key_size         # 32

    key = jax.random.PRNGKey(0)
    ks = jax.random.split(key, 9)
    s = 0.1
    params = {
        "wq": s * jax.random.normal(ks[0], (D, HK), jnp.float32),
        "bq": s * jax.random.normal(ks[1], (HK,), jnp.float32),
        "wk": s * jax.random.normal(ks[2], (D, HK), jnp.float32),
        "bk": s * jax.random.normal(ks[3], (HK,), jnp.float32),
        "wv": s * jax.random.normal(ks[4], (D, HK), jnp.float32),
        "bv": s * jax.random.normal(ks[5], (HK,), jnp.float32),
        "wo": s * jax.random.normal(ks[6], (HK, D), jnp.float32),
        "bo": s * jax.random.normal(ks[7], (D,), jnp.float32),
    }
    x = jax.random.normal(ks[8], (B, T, D), jnp.float32)

    packed = prepare_att_params(params, num_heads, key_size)   # once per params
    y = jax.block_until_ready(att_forward(x, packed, num_heads, key_size))
    y_ref = att_reference(x, params, num_heads, key_size)

    assert y.shape == (B, T, D)
    # bf16 MXU operands + approx reciprocal => slightly looser tolerance than
    # a pure-f32 comparison.
    assert jnp.allclose(y, y_ref, rtol=3e-2, atol=3e-2), "mismatch vs reference"

    print("KERNEL_OK")
</pallas_src>

<mosaic_0001>
module attributes {stable_mosaic.version = 11 : i64} {
  func.func @att_kernel(%arg0: i32, %arg1: memref<16x32xf32, #tpu.memory_space<vmem>>, %arg2: memref<32x96xbf16, #tpu.memory_space<vmem>>, %arg3: memref<1x96xf32, #tpu.memory_space<vmem>>, %arg4: memref<32x128xbf16, #tpu.memory_space<vmem>>, %arg5: memref<1x128xf32, #tpu.memory_space<vmem>>, %arg6: memref<16x128xf32, #tpu.memory_space<vmem>>) attributes {dimension_semantics = [#tpu.dimension_semantics<parallel>], iteration_bounds = array<i64: 1>, scalar_prefetch = 0 : i64, scratch_operands = 0 : i64, tpu.core_type = #tpu.core_type<tc>, window_params = [{transform_indices = @transform_0, window_bounds = array<i64: 16, 32>}, {pipeline_mode = #tpu.pipeline_mode<synchronous>, transform_indices = @transform_1, window_bounds = array<i64: 32, 96>}, {pipeline_mode = #tpu.pipeline_mode<synchronous>, transform_indices = @transform_2, window_bounds = array<i64: 1, 96>}, {pipeline_mode = #tpu.pipeline_mode<synchronous>, transform_indices = @transform_3, window_bounds = array<i64: 32, 128>}, {pipeline_mode = #tpu.pipeline_mode<synchronous>, transform_indices = @transform_4, window_bounds = array<i64: 1, 128>}, {transform_indices = @transform_5, window_bounds = array<i64: 16, 128>}]} {
    %c0 = arith.constant 0 : index
    %c0_0 = arith.constant 0 : index
    %0 = vector.load %arg1[%c0, %c0_0] : memref<16x32xf32, #tpu.memory_space<vmem>>, vector<16x32xf32>
    %1 = arith.truncf %0 : vector<16x32xf32> to vector<16x32xbf16>
    %c0_1 = arith.constant 0 : index
    %c0_2 = arith.constant 0 : index
    %2 = vector.load %arg2[%c0_1, %c0_2] : memref<32x96xbf16, #tpu.memory_space<vmem>>, vector<32x96xbf16>
    %cst = arith.constant dense<0.000000e+00> : vector<16x96xf32>
    %3 = tpu.matmul %1, %2, %cst {dimension_numbers = #tpu.dot_dimension_numbers<[1], [0], [0], [1], [0, 0, 1, 1], [], []>} : vector<16x32xbf16>, vector<32x96xbf16>, vector<16x96xf32> -> vector<16x96xf32>
    %c0_3 = arith.constant 0 : index
    %c0_4 = arith.constant 0 : index
    %4 = vector.load %arg3[%c0_3, %c0_4] : memref<1x96xf32, #tpu.memory_space<vmem>>, vector<1x96xf32>
    %5 = vector.broadcast %4 : vector<1x96xf32> to vector<16x96xf32>
    %6 = arith.addf %3, %5 : vector<16x96xf32>
    %7 = vector.extract_strided_slice %6 {offsets = [0, 0], sizes = [16, 32], strides = [1, 1]} : vector<16x96xf32> to vector<16x32xf32>
    %8 = vector.shape_cast %7 : vector<16x32xf32> to vector<2x8x32xf32>
    %9 = arith.truncf %8 : vector<2x8x32xf32> to vector<2x8x32xbf16>
    %10 = vector.extract_strided_slice %6 {offsets = [0, 32], sizes = [16, 32], strides = [1, 1]} : vector<16x96xf32> to vector<16x32xf32>
    %11 = vector.shape_cast %10 : vector<16x32xf32> to vector<2x8x32xf32>
    %12 = arith.truncf %11 : vector<2x8x32xf32> to vector<2x8x32xbf16>
    %13 = vector.extract_strided_slice %6 {offsets = [0, 64], sizes = [16, 32], strides = [1, 1]} : vector<16x96xf32> to vector<16x32xf32>
    %14 = vector.shape_cast %13 : vector<16x32xf32> to vector<2x8x32xf32>
    %15 = arith.truncf %14 : vector<2x8x32xf32> to vector<2x8x32xbf16>
    %16 = vector.extract_strided_slice %9 {offsets = [0, 0, 0], sizes = [2, 8, 8], strides = [1, 1, 1]} : vector<2x8x32xbf16> to vector<2x8x8xbf16>
    %17 = vector.extract_strided_slice %12 {offsets = [0, 0, 0], sizes = [2, 8, 8], strides = [1, 1, 1]} : vector<2x8x32xbf16> to vector<2x8x8xbf16>
    %18 = vector.extract_strided_slice %15 {offsets = [0, 0, 0], sizes = [2, 8, 8], strides = [1, 1, 1]} : vector<2x8x32xbf16> to vector<2x8x8xbf16>
    "tpu.trace_start"() <{level = 10 : i32, message = "btk,bsk->bts"}> : () -> ()
    %cst_5 = arith.constant dense<0.000000e+00> : vector<2x8x8xf32>
    %19 = tpu.matmul %16, %17, %cst_5 {dimension_numbers = #tpu.dot_dimension_numbers<[2], [2], [1], [1], [0, 0, 0, 1, 1, 1], [0], [0]>} : vector<2x8x8xbf16>, vector<2x8x8xbf16>, vector<2x8x8xf32> -> vector<2x8x8xf32>
    "tpu.trace_stop"() : () -> ()
    %cst_6 = arith.constant dense<0xFF800000> : vector<2x8xf32>
    %20 = vector.multi_reduction <maximumf>, %19, %cst_6 [2] : vector<2x8x8xf32> to vector<2x8xf32>
    %21 = vector.shape_cast %20 : vector<2x8xf32> to vector<2x8x1xf32>
    %22 = vector.broadcast %21 : vector<2x8x1xf32> to vector<2x8x8xf32>
    %23 = arith.subf %19, %22 : vector<2x8x8xf32>
    %24 = math.exp %23 : vector<2x8x8xf32>
    %cst_7 = arith.constant dense<0.000000e+00> : vector<2x8xf32>
    %25 = vector.multi_reduction <add>, %24, %cst_7 [2] : vector<2x8x8xf32> to vector<2x8xf32>
    %26 = vector.shape_cast %25 : vector<2x8xf32> to vector<2x8x1xf32>
    %27 = tpu.reciprocal %26 {approx = true} : vector<2x8x1xf32> -> vector<2x8x1xf32>
    %28 = vector.broadcast %27 : vector<2x8x1xf32> to vector<2x8x8xf32>
    %29 = arith.mulf %24, %28 : vector<2x8x8xf32>
    %30 = arith.truncf %29 : vector<2x8x8xf32> to vector<2x8x8xbf16>
    "tpu.trace_start"() <{level = 10 : i32, message = "bts,bsk->btk"}> : () -> ()
    %cst_8 = arith.constant dense<0.000000e+00> : vector<2x8x8xf32>
    %31 = tpu.matmul %30, %18, %cst_8 {dimension_numbers = #tpu.dot_dimension_numbers<[2], [1], [1], [2], [0, 0, 0, 1, 1, 2], [0], [0]>} : vector<2x8x8xbf16>, vector<2x8x8xbf16>, vector<2x8x8xf32> -> vector<2x8x8xf32>
    "tpu.trace_stop"() : () -> ()
    %32 = vector.extract_strided_slice %9 {offsets = [0, 0, 8], sizes = [2, 8, 8], strides = [1, 1, 1]} : vector<2x8x32xbf16> to vector<2x8x8xbf16>
    %33 = vector.extract_strided_slice %12 {offsets = [0, 0, 8], sizes = [2, 8, 8], strides = [1, 1, 1]} : vector<2x8x32xbf16> to vector<2x8x8xbf16>
    %34 = vector.extract_strided_slice %15 {offsets = [0, 0, 8], sizes = [2, 8, 8], strides = [1, 1, 1]} : vector<2x8x32xbf16> to vector<2x8x8xbf16>
    "tpu.trace_start"() <{level = 10 : i32, message = "btk,bsk->bts"}> : () -> ()
    %cst_9 = arith.constant dense<0.000000e+00> : vector<2x8x8xf32>
    %35 = tpu.matmul %32, %33, %cst_9 {dimension_numbers = #tpu.dot_dimension_numbers<[2], [2], [1], [1], [0, 0, 0, 1, 1, 1], [0], [0]>} : vector<2x8x8xbf16>, vector<2x8x8xbf16>, vector<2x8x8xf32> -> vector<2x8x8xf32>
    "tpu.trace_stop"() : () -> ()
    %cst_10 = arith.constant dense<0xFF800000> : vector<2x8xf32>
    %36 = vector.multi_reduction <maximumf>, %35, %cst_10 [2] : vector<2x8x8xf32> to vector<2x8xf32>
    %37 = vector.shape_cast %36 : vector<2x8xf32> to vector<2x8x1xf32>
    %38 = vector.broadcast %37 : vector<2x8x1xf32> to vector<2x8x8xf32>
    %39 = arith.subf %35, %38 : vector<2x8x8xf32>
    %40 = math.exp %39 : vector<2x8x8xf32>
    %cst_11 = arith.constant dense<0.000000e+00> : vector<2x8xf32>
    %41 = vector.multi_reduction <add>, %40, %cst_11 [2] : vector<2x8x8xf32> to vector<2x8xf32>
    %42 = vector.shape_cast %41 : vector<2x8xf32> to vector<2x8x1xf32>
    %43 = tpu.reciprocal %42 {approx = true} : vector<2x8x1xf32> -> vector<2x8x1xf32>
    %44 = vector.broadcast %43 : vector<2x8x1xf32> to vector<2x8x8xf32>
    %45 = arith.mulf %40, %44 : vector<2x8x8xf32>
    %46 = arith.truncf %45 : vector<2x8x8xf32> to vector<2x8x8xbf16>
    "tpu.trace_start"() <{level = 10 : i32, message = "bts,bsk->btk"}> : () -> ()
    %cst_12 = arith.constant dense<0.000000e+00> : vector<2x8x8xf32>
    %47 = tpu.matmul %46, %34, %cst_12 {dimension_numbers = #tpu.dot_dimension_numbers<[2], [1], [1], [2], [0, 0, 0, 1, 1, 2], [0], [0]>} : vector<2x8x8xbf16>, vector<2x8x8xbf16>, vector<2x8x8xf32> -> vector<2x8x8xf32>
    "tpu.trace_stop"() : () -> ()
    %48 = vector.extract_strided_slice %9 {offsets = [0, 0, 16], sizes = [2, 8, 8], strides = [1, 1, 1]} : vector<2x8x32xbf16> to vector<2x8x8xbf16>
    %49 = vector.extract_strided_slice %12 {offsets = [0, 0, 16], sizes = [2, 8, 8], strides = [1, 1, 1]} : vector<2x8x32xbf16> to vector<2x8x8xbf16>
    %50 = vector.extract_strided_slice %15 {offsets = [0, 0, 16], sizes = [2, 8, 8], strides = [1, 1, 1]} : vector<2x8x32xbf16> to vector<2x8x8xbf16>
    "tpu.trace_start"() <{level = 10 : i32, message = "btk,bsk->bts"}> : () -> ()
    %cst_13 = arith.constant dense<0.000000e+00> : vector<2x8x8xf32>
    %51 = tpu.matmul %48, %49, %cst_13 {dimension_numbers = #tpu.dot_dimension_numbers<[2], [2], [1], [1], [0, 0, 0, 1, 1, 1], [0], [0]>} : vector<2x8x8xbf16>, vector<2x8x8xbf16>, vector<2x8x8xf32> -> vector<2x8x8xf32>
    "tpu.trace_stop"() : () -> ()
    %cst_14 = arith.constant dense<0xFF800000> : vector<2x8xf32>
    %52 = vector.multi_reduction <maximumf>, %51, %cst_14 [2] : vector<2x8x8xf32> to vector<2x8xf32>
    %53 = vector.shape_cast %52 : vector<2x8xf32> to vector<2x8x1xf32>
    %54 = vector.broadcast %53 : vector<2x8x1xf32> to vector<2x8x8xf32>
    %55 = arith.subf %51, %54 : vector<2x8x8xf32>
    %56 = math.exp %55 : vector<2x8x8xf32>
    %cst_15 = arith.constant dense<0.000000e+00> : vector<2x8xf32>
    %57 = vector.multi_reduction <add>, %56, %cst_15 [2] : vector<2x8x8xf32> to vector<2x8xf32>
    %58 = vector.shape_cast %57 : vector<2x8xf32> to vector<2x8x1xf32>
    %59 = tpu.reciprocal %58 {approx = true} : vector<2x8x1xf32> -> vector<2x8x1xf32>
    %60 = vector.broadcast %59 : vector<2x8x1xf32> to vector<2x8x8xf32>
    %61 = arith.mulf %56, %60 : vector<2x8x8xf32>
    %62 = arith.truncf %61 : vector<2x8x8xf32> to vector<2x8x8xbf16>
    "tpu.trace_start"() <{level = 10 : i32, message = "bts,bsk->btk"}> : () -> ()
    %cst_16 = arith.constant dense<0.000000e+00> : vector<2x8x8xf32>
    %63 = tpu.matmul %62, %50, %cst_16 {dimension_numbers = #tpu.dot_dimension_numbers<[2], [1], [1], [2], [0, 0, 0, 1, 1, 2], [0], [0]>} : vector<2x8x8xbf16>, vector<2x8x8xbf16>, vector<2x8x8xf32> -> vector<2x8x8xf32>
    "tpu.trace_stop"() : () -> ()
    %64 = vector.extract_strided_slice %9 {offsets = [0, 0, 24], sizes = [2, 8, 8], strides = [1, 1, 1]} : vector<2x8x32xbf16> to vector<2x8x8xbf16>
    %65 = vector.extract_strided_slice %12 {offsets = [0, 0, 24], sizes = [2, 8, 8], strides = [1, 1, 1]} : vector<2x8x32xbf16> to vector<2x8x8xbf16>
    %66 = vector.extract_strided_slice %15 {offsets = [0, 0, 24], sizes = [2, 8, 8], strides = [1, 1, 1]} : vector<2x8x32xbf16> to vector<2x8x8xbf16>
    "tpu.trace_start"() <{level = 10 : i32, message = "btk,bsk->bts"}> : () -> ()
    %cst_17 = arith.constant dense<0.000000e+00> : vector<2x8x8xf32>
    %67 = tpu.matmul %64, %65, %cst_17 {dimension_numbers = #tpu.dot_dimension_numbers<[2], [2], [1], [1], [0, 0, 0, 1, 1, 1], [0], [0]>} : vector<2x8x8xbf16>, vector<2x8x8xbf16>, vector<2x8x8xf32> -> vector<2x8x8xf32>
    "tpu.trace_stop"() : () -> ()
    %cst_18 = arith.constant dense<0xFF800000> : vector<2x8xf32>
    %68 = vector.multi_reduction <maximumf>, %67, %cst_18 [2] : vector<2x8x8xf32> to vector<2x8xf32>
    %69 = vector.shape_cast %68 : vector<2x8xf32> to vector<2x8x1xf32>
    %70 = vector.broadcast %69 : vector<2x8x1xf32> to vector<2x8x8xf32>
    %71 = arith.subf %67, %70 : vector<2x8x8xf32>
    %72 = math.exp %71 : vector<2x8x8xf32>
    %cst_19 = arith.constant dense<0.000000e+00> : vector<2x8xf32>
    %73 = vector.multi_reduction <add>, %72, %cst_19 [2] : vector<2x8x8xf32> to vector<2x8xf32>
    %74 = vector.shape_cast %73 : vector<2x8xf32> to vector<2x8x1xf32>
    %75 = tpu.reciprocal %74 {approx = true} : vector<2x8x1xf32> -> vector<2x8x1xf32>
    %76 = vector.broadcast %75 : vector<2x8x1xf32> to vector<2x8x8xf32>
    %77 = arith.mulf %72, %76 : vector<2x8x8xf32>
    %78 = arith.truncf %77 : vector<2x8x8xf32> to vector<2x8x8xbf16>
    "tpu.trace_start"() <{level = 10 : i32, message = "bts,bsk->btk"}> : () -> ()
    %cst_20 = arith.constant dense<0.000000e+00> : vector<2x8x8xf32>
    %79 = tpu.matmul %78, %66, %cst_20 {dimension_numbers = #tpu.dot_dimension_numbers<[2], [1], [1], [2], [0, 0, 0, 1, 1, 2], [0], [0]>} : vector<2x8x8xbf16>, vector<2x8x8xbf16>, vector<2x8x8xf32> -> vector<2x8x8xf32>
    "tpu.trace_stop"() : () -> ()
    %80 = tpu.concatenate %31, %47, %63, %79 in 2 : vector<2x8x8xf32>, vector<2x8x8xf32>, vector<2x8x8xf32>, vector<2x8x8xf32> -> vector<2x8x32xf32>
    %81 = vector.shape_cast %80 : vector<2x8x32xf32> to vector<16x32xf32>
    %82 = arith.truncf %81 : vector<16x32xf32> to vector<16x32xbf16>
    %c0_21 = arith.constant 0 : index
    %c0_22 = arith.constant 0 : index
    %83 = vector.load %arg4[%c0_21, %c0_22] : memref<32x128xbf16, #tpu.memory_space<vmem>>, vector<32x128xbf16>
    %cst_23 = arith.constant dense<0.000000e+00> : vector<16x128xf32>
    %84 = tpu.matmul %82, %83, %cst_23 {dimension_numbers = #tpu.dot_dimension_numbers<[1], [0], [0], [1], [0, 0, 1, 1], [], []>} : vector<16x32xbf16>, vector<32x128xbf16>, vector<16x128xf32> -> vector<16x128xf32>
    %c0_24 = arith.constant 0 : index
    %c0_25 = arith.constant 0 : index
    %85 = vector.load %arg5[%c0_24, %c0_25] : memref<1x128xf32, #tpu.memory_space<vmem>>, vector<1x128xf32>
    %86 = vector.broadcast %85 : vector<1x128xf32> to vector<16x128xf32>
    %87 = arith.addf %84, %86 : vector<16x128xf32>
    %cst_26 = arith.constant 0.000000e+00 : f32
    %88 = vector.broadcast %cst_26 : f32 to vector<16x96xf32>
    %89 = tpu.concatenate %0, %88 in 1 : vector<16x32xf32>, vector<16x96xf32> -> vector<16x128xf32>
    %90 = arith.addf %89, %87 : vector<16x128xf32>
    %c0_27 = arith.constant 0 : index
    %c0_28 = arith.constant 0 : index
    %91 = vector.load %arg6[%c0_27, %c0_28] : memref<16x128xf32, #tpu.memory_space<vmem>>, vector<16x128xf32>
    tpu.vector_store %arg6[%c0_27, %c0_28], %90 {strides = array<i32>} : memref<16x128xf32, #tpu.memory_space<vmem>>, vector<16x128xf32>,
    return
  }
  func.func @transform_0(%arg0: i32) -> (i32, i32) {
    %c0_i32 = arith.constant 0 : i32
    %c0_i32_0 = arith.constant 0 : i32
    return %arg0, %c0_i32 : i32, i32
  }
  func.func @transform_1(%arg0: i32) -> (i32, i32) {
    %c0_i32 = arith.constant 0 : i32
    %c0_i32_0 = arith.constant 0 : i32
    %c0_i32_1 = arith.constant 0 : i32
    return %c0_i32, %c0_i32_0 : i32, i32
  }
  func.func @transform_2(%arg0: i32) -> (i32, i32) {
    %c0_i32 = arith.constant 0 : i32
    %c0_i32_0 = arith.constant 0 : i32
    %c0_i32_1 = arith.constant 0 : i32
    return %c0_i32, %c0_i32_0 : i32, i32
  }
  func.func @transform_3(%arg0: i32) -> (i32, i32) {
    %c0_i32 = arith.constant 0 : i32
    %c0_i32_0 = arith.constant 0 : i32
    %c0_i32_1 = arith.constant 0 : i32
    return %c0_i32, %c0_i32_0 : i32, i32
  }
  func.func @transform_4(%arg0: i32) -> (i32, i32) {
    %c0_i32 = arith.constant 0 : i32
    %c0_i32_0 = arith.constant 0 : i32
    %c0_i32_1 = arith.constant 0 : i32
    return %c0_i32, %c0_i32_0 : i32, i32
  }
  func.func @transform_5(%arg0: i32) -> (i32, i32) {
    %c0_i32 = arith.constant 0 : i32
    %c0_i32_0 = arith.constant 0 : i32
    return %arg0, %c0_i32 : i32, i32
  }
}

</mosaic_0001>

<llo_original>
// kernel: tpu_custom_call.1
$region0: #{tpu_custom_call.1}
  #allocation0 [shape = 'u32[]', space=smem, size = 0x4, offset = 0x4, fixed_abs, tag = 'smem constant byte address 0x4 - core index']
  #allocation1 [shape = 'u32[72,128]{1,0:T(1,128)}', space=vmem, size = 0x9000, scoped, tag = 'internal scratch']
  %s0 = inlined_call_operand.hbm [shape: f32[16,32], index: 0, kind: input, shape index: {}]
  %s1 = inlined_call_operand.hbm [shape: bf16[32,96], index: 1, kind: input, shape index: {}]
  %s2 = inlined_call_operand.vmem [shape: f32[1,96], index: 2, kind: input, shape index: {}]
  %s3 = inlined_call_operand.hbm [shape: bf16[32,128], index: 3, kind: input, shape index: {}]
  %s4 = inlined_call_operand.vmem [shape: f32[1,128], index: 4, kind: input, shape index: {}]
  %s5 = inlined_call_operand.hbm [shape: f32[16,128], index: 5, kind: output, shape index: {}]
  %s6 = sld [smem:[#allocation0]]
  $region42: #{tpu_custom_call.1} parent=0
    _
  %s8 = ssub.s32 1, %s6
  %s9 = scalar_select 0, %s8, %s6
  $region1: #{tpu_custom_call.1} parent=0
    #allocation2 [shape = 'u8[8192]{0}', space=vmem, size = 0x2000, scoped, tag = 'input window, operand 0, single buffered']
    #allocation3 [shape = 's32[1]{0}', space=sflag, size = 0x4, scoped, tag = 'scoped memory for tpu_custom_call.1']
    #allocation4 [shape = 's32[1]{0}', space=sflag, size = 0x4, scoped, tag = 'scoped memory for tpu_custom_call.1']
    #allocation5 [shape = 'u8[8192]{0}', space=vmem, size = 0x2000, scoped, tag = 'input window, operand 1, single buffered']
    #allocation6 [shape = 's32[1]{0}', space=sflag, size = 0x4, scoped, tag = 'scoped memory for tpu_custom_call.1']
    #allocation7 [shape = 'u8[8192]{0}', space=vmem, size = 0x2000, scoped, tag = 'input window, operand 3, single buffered']
    #allocation8 [shape = 'u8[8192]{0}', space=vmem, size = 0x2000, scoped, tag = 'output window, operand 0, single buffered']
    %10 = vsyncpa [#allocation3], 0
    %11 = vsyncpa [#allocation6], 0
    %12 = vsyncpa [#allocation4], 0
    // Predicated region
    $region2: #{tpu_custom_call.1} parent=1 // pred_check
      _
    $region3: #{tpu_custom_call.1} parent=1 // pred_check_branch
      %14 = sbr.rel (0) target = $region5
    $region4: #{tpu_custom_call.1} parent=1 // pred_region
      %16 = vsyncadd [#allocation3], 0
      %s17 = sshll.u32 %s0, 4
      %s18 = int_to_ptr.hbm [resolvable:$true] %s17
      %s19 = sshll.u32 [#allocation2], 4
      %s20 = int_to_ptr.vmem [resolvable:$true] %s19
      %25 = dma.hbm_to_vmem [thread:$0]  %s18, 256, %s20, [#allocation3], 128, 128, 8
    $region5: #{tpu_custom_call.1} parent=1 // pred_fallthru
      _
    // Predicated region
    $region6: #{tpu_custom_call.1} parent=1 // pred_check
      _
    $region7: #{tpu_custom_call.1} parent=1 // pred_check_branch
      %27 = sbr.rel (0) target = $region9
    $region8: #{tpu_custom_call.1} parent=1 // pred_region
      %29 = vsyncadd [#allocation6], 0
      %s30 = sshll.u32 %s1, 4
      %s31 = int_to_ptr.hbm [resolvable:$true] %s30
      %s32 = sshll.u32 [#allocation5], 4
      %s33 = int_to_ptr.vmem [resolvable:$true] %s32
      %38 = dma.hbm_to_vmem [thread:$0]  %s31, 256, %s33, [#allocation6], 64, 64, 4
    $region9: #{tpu_custom_call.1} parent=1 // pred_fallthru
      _
    // Predicated region
    $region10: #{tpu_custom_call.1} parent=1 // pred_check
      _
    $region11: #{tpu_custom_call.1} parent=1 // pred_check_branch
      %40 = sbr.rel (0) target = $region13
    $region12: #{tpu_custom_call.1} parent=1 // pred_region
      _
    $region13: #{tpu_custom_call.1} parent=1 // pred_fallthru
      _
    // Predicated region
    $region14: #{tpu_custom_call.1} parent=1 // pred_check
      _
    $region15: #{tpu_custom_call.1} parent=1 // pred_check_branch
      %42 = sbr.rel (0) target = $region17
    $region16: #{tpu_custom_call.1} parent=1 // pred_region
      %44 = vsyncadd [#allocation6], 0
      %s45 = sshll.u32 %s3, 4
      %s46 = int_to_ptr.hbm [resolvable:$true] %s45
      %s47 = sshll.u32 [#allocation7], 4
      %s48 = int_to_ptr.vmem [resolvable:$true] %s47
      %53 = dma.hbm_to_vmem [thread:$0]  %s46, 256, %s48, [#allocation6], 64, 64, 4
    $region17: #{tpu_custom_call.1} parent=1 // pred_fallthru
      _
    // Predicated region
    $region18: #{tpu_custom_call.1} parent=1 // pred_check
      _
    $region19: #{tpu_custom_call.1} parent=1 // pred_check_branch
      %55 = sbr.rel (0) target = $region21
    $region20: #{tpu_custom_call.1} parent=1 // pred_region
      _
    $region21: #{tpu_custom_call.1} parent=1 // pred_fallthru
      _
    // Predicated region
    $region22: #{tpu_custom_call.1} parent=1 // pred_check
      _
    $region23: #{tpu_custom_call.1} parent=1 // pred_check_branch
      %57 = sbr.rel (0) target = $region25
    $region24: #{tpu_custom_call.1} parent=1 // pred_region
      %59 = dma.done [#allocation3], 256
    $region25: #{tpu_custom_call.1} parent=1 // pred_fallthru
      _
    // Predicated region
    $region26: #{tpu_custom_call.1} parent=1 // pred_check
      _
    $region27: #{tpu_custom_call.1} parent=1 // pred_check_branch
      %61 = sbr.rel (0) target = $region29
    $region28: #{tpu_custom_call.1} parent=1 // pred_region
      %63 = dma.done [#allocation6], 256
    $region29: #{tpu_custom_call.1} parent=1 // pred_fallthru
      _
    // Predicated region
    $region30: #{tpu_custom_call.1} parent=1 // pred_check
      _
    $region31: #{tpu_custom_call.1} parent=1 // pred_check_branch
      %65 = sbr.rel (0) target = $region33
    $region32: #{tpu_custom_call.1} parent=1 // pred_region
      %67 = dma.done [#allocation6], 256
    $region33: #{tpu_custom_call.1} parent=1 // pred_fallthru
      _
    %v69 = vld [vmem:[#allocation2] sm:$0xff]
    %v70 = vld [vmem:[#allocation2 + $0x8] sm:$0xff]
    %v71 = vpack.c.bf16 %v70, %v69
    %v72 = vld [vmem:[#allocation5] sm:$0xf]
    %v73 = vld [vmem:[#allocation5 + $0x4] sm:$0xf]
    %v74 = vld [vmem:[#allocation5 + $0x8] sm:$0xf]
    %v75 = vld [vmem:[#allocation5 + $0xc] sm:$0xf]
    %v76 = vld [vmem:[%s2] sm:$0x1]
    %v78 = vperm.slane %v76, 0
    %v84 = vunpack.c.l.b16 %v72
    %v85 = vunpack.c.l.b16 %v73
    %v86 = vunpack.c.l.b16 %v74
    %v87 = vunpack.c.l.b16 %v75
    %v88 = vpack.c.b16 %v85, %v84
    %v89 = vpack.c.b16 %v87, %v86
    %vm92 = vcmask 261120
    %v94 = vsel %vm92, %v71, 0
    %96 = vmatpush.bf16.msra.mxu0 0
    %97 = vmatpush.bf16.msra.mxu0 0
    %98 = vmatpush.bf16.msra.mxu0 0
    %99 = vmatpush.bf16.msra.mxu0 0
    %100 = vmatpush.bf16.msra.mxu0 0
    %101 = vmatpush.bf16.msra.mxu0 0
    %102 = vmatpush.bf16.msra.mxu0 %v89
    %103 = vmatpush.bf16.msra.mxu0 %v88
    %104 = vmatmul.bf16.gmra.mxu0 %v94
    %v105 = vpop.f32.mrf.mxu0
    %v106 = vadd.f32 %v78, %v105
    %v107 = vpop.f32.mrf.mxu0
    %v108 = vadd.f32 %v78, %v107
    %109 = vdwg.mxu0
    %v110 = vpack.c.bf16 %v106, %v106
    %v111 = vpack.c.bf16 %v108, %v108
    %v113 = vunpack.c.l.b16 %v110
    %v114 = vpack.c.b16 %v113, %v113
    %115 = vrot.lane.b32.xlu0 %v114, 96
    %v116 = vpop.permute.xlu0 %115
    %vm117 = vcmask 64512
    %v119 = vsel %vm117, %v110, 0
    %v122 = vsel %vm117, %v116, 0
    %124 = vmatpush.bf16.xpose.msra.mxu0 0
    %125 = vmatpush.bf16.xpose.msra.mxu0 0
    %126 = vmatpush.bf16.xpose.msra.mxu0 0
    %127 = vmatpush.bf16.xpose.msra.mxu0 0
    %128 = vmatpush.bf16.xpose.msra.mxu0 0
    %129 = vmatpush.bf16.xpose.msra.mxu0 0
    %130 = vmatpush.bf16.xpose.msra.mxu0 0
    %131 = vmatpush.bf16.xpose.msra.mxu0 %v122
    %132 = vmatmul.bf16.gmra.mxu0 %v119
    %v133 = vpop.f32.mrf.mxu0
    %v134 = vadd.f32 0.0, %v133
    %v135 = vpop.f32.mrf.mxu0
    %136 = vdwg.mxu0
    %v138 = vunpack.c.l.b16 %v111
    %v139 = vpack.c.b16 %v138, %v138
    %140 = vrot.lane.b32.xlu0 %v139, 96
    %v141 = vpop.permute.xlu0 %140
    %v143 = vsel %vm117, %v111, 0
    %v146 = vsel %vm117, %v141, 0
    %148 = vmatpush.bf16.xpose.msra.mxu0 0
    %149 = vmatpush.bf16.xpose.msra.mxu0 0
    %150 = vmatpush.bf16.xpose.msra.mxu0 0
    %151 = vmatpush.bf16.xpose.msra.mxu0 0
    %152 = vmatpush.bf16.xpose.msra.mxu0 0
    %153 = vmatpush.bf16.xpose.msra.mxu0 0
    %154 = vmatpush.bf16.xpose.msra.mxu0 0
    %155 = vmatpush.bf16.xpose.msra.mxu0 %v146
    %156 = vmatmul.bf16.gmra.mxu0 %v143
    %v157 = vpop.f32.mrf.mxu0
    %v158 = vadd.f32 0.0, %v157
    %v159 = vpop.f32.mrf.mxu0
    %160 = vdwg.mxu0
    %v161 = vsel %vm117, %v134, -inf
    %162 = vmax.xlane.f32.xlu0 %v161
    %v163 = vpop.xlane.xlu0 %162
    %v164 = vsel %vm117, %v158, -inf
    %165 = vmax.xlane.f32.xlu0 %v164
    %v166 = vpop.xlane.xlu0 %165
    %v167 = vsub.f32 %v134, %v163
    %v168 = vsub.f32 %v158, %v166
    %v169 = vmul.f32 %v167, 1.442695
    %v170 = vpow.pop %v169
    %v171 = vmul.f32 %v168, 1.442695
    %v172 = vpow.pop %v171
    %v173 = vsel %vm117, %v170, 0.0
    %174 = vadd.xlane.f32.xlu0 %v173
    %v175 = vpop.xlane.xlu0 %174
    %v176 = vsel %vm117, %v172, 0.0
    %177 = vadd.xlane.f32.xlu0 %v176
    %v178 = vpop.xlane.xlu0 %177
    %v179 = vrcp.pop %v175
    %v180 = vrcp.pop %v178
    %v181 = vmul.f32 %v170, %v179
    %v182 = vmul.f32 %v172, %v180
    %v183 = vpack.c.bf16 %v181, %v181
    %v184 = vpack.c.bf16 %v182, %v182
    %185 = vrot.lane.b32.xlu0 %v114, 64
    %v186 = vpop.permute.xlu0 %185
    %v188 = vsel %vm117, %v183, 0
    %vm190 = vcmask 1043456
    %v192 = vsel %vm190, %v186, 0
    %194 = vmatpush.bf16.msra.mxu0 0
    %195 = vmatpush.bf16.msra.mxu0 0
    %196 = vmatpush.bf16.msra.mxu0 0
    %197 = vmatpush.bf16.msra.mxu0 0
    %198 = vmatpush.bf16.msra.mxu0 0
    %199 = vmatpush.bf16.msra.mxu0 0
    %200 = vmatpush.bf16.msra.mxu0 0
    %201 = vmatpush.bf16.msra.mxu0 %v192
    %202 = vmatmul.bf16.gmra.mxu0 %v188
    %v203 = vpop.f32.mrf.mxu0
    %v204 = vadd.f32 0.0, %v203
    %v205 = vpop.f32.mrf.mxu0
    %206 = vdwg.mxu0
    %207 = vrot.lane.b32.xlu0 %v139, 64
    %v208 = vpop.permute.xlu0 %207
    %v210 = vsel %vm117, %v184, 0
    %v213 = vsel %vm190, %v208, 0
    %215 = vmatpush.bf16.msra.mxu0 0
    %216 = vmatpush.bf16.msra.mxu0 0
    %217 = vmatpush.bf16.msra.mxu0 0
    %218 = vmatpush.bf16.msra.mxu0 0
    %219 = vmatpush.bf16.msra.mxu0 0
    %220 = vmatpush.bf16.msra.mxu0 0
    %221 = vmatpush.bf16.msra.mxu0 0
    %222 = vmatpush.bf16.msra.mxu0 %v213
    %223 = vmatmul.bf16.gmra.mxu0 %v210
    %v224 = vpop.f32.mrf.mxu0
    %v225 = vadd.f32 0.0, %v224
    %v226 = vpop.f32.mrf.mxu0
    %227 = vdwg.mxu0
    %228 = vrot.lane.b32.xlu0 %v114, 120
    %v229 = vpop.permute.xlu0 %228
    %230 = vrot.lane.b32.xlu0 %v114, 88
    %v231 = vpop.permute.xlu0 %230
    %v233 = vsel %vm117, %v229, 0
    %v236 = vsel %vm117, %v231, 0
    %238 = vmatpush.bf16.xpose.msra.mxu0 0
    %239 = vmatpush.bf16.xpose.msra.mxu0 0
    %240 = vmatpush.bf16.xpose.msra.mxu0 0
    %241 = vmatpush.bf16.xpose.msra.mxu0 0
    %242 = vmatpush.bf16.xpose.msra.mxu0 0
    %243 = vmatpush.bf16.xpose.msra.mxu0 0
    %244 = vmatpush.bf16.xpose.msra.mxu0 0
    %245 = vmatpush.bf16.xpose.msra.mxu0 %v236
    %246 = vmatmul.bf16.gmra.mxu0 %v233
    %v247 = vpop.f32.mrf.mxu0
    %v248 = vadd.f32 0.0, %v247
    %v249 = vpop.f32.mrf.mxu0
    %250 = vdwg.mxu0
    %251 = vrot.lane.b32.xlu0 %v139, 120
    %v252 = vpop.permute.xlu0 %251
    %253 = vrot.lane.b32.xlu0 %v139, 88
    %v254 = vpop.permute.xlu0 %253
    %v256 = vsel %vm117, %v252, 0
    %v259 = vsel %vm117, %v254, 0
    %261 = vmatpush.bf16.xpose.msra.mxu0 0
    %262 = vmatpush.bf16.xpose.msra.mxu0 0
    %263 = vmatpush.bf16.xpose.msra.mxu0 0
    %264 = vmatpush.bf16.xpose.msra.mxu0 0
    %265 = vmatpush.bf16.xpose.msra.mxu0 0
    %266 = vmatpush.bf16.xpose.msra.mxu0 0
    %267 = vmatpush.bf16.xpose.msra.mxu0 0
    %268 = vmatpush.bf16.xpose.msra.mxu0 %v259
    %269 = vmatmul.bf16.gmra.mxu0 %v256
    %v270 = vpop.f32.mrf.mxu0
    %v271 = vadd.f32 0.0, %v270
    %v272 = vpop.f32.mrf.mxu0
    %273 = vdwg.mxu0
    %v274 = vsel %vm117, %v248, -inf
    %275 = vmax.xlane.f32.xlu0 %v274
    %v276 = vpop.xlane.xlu0 %275
    %v277 = vsel %vm117, %v271, -inf
    %278 = vmax.xlane.f32.xlu0 %v277
    %v279 = vpop.xlane.xlu0 %278
    %v280 = vsub.f32 %v248, %v276
    %v281 = vsub.f32 %v271, %v279
    %v282 = vmul.f32 %v280, 1.442695
    %v283 = vpow.pop %v282
    %v284 = vmul.f32 %v281, 1.442695
    %v285 = vpow.pop %v284
    %v286 = vsel %vm117, %v283, 0.0
    %287 = vadd.xlane.f32.xlu0 %v286
    %v288 = vpop.xlane.xlu0 %287
    %v289 = vsel %vm117, %v285, 0.0
    %290 = vadd.xlane.f32.xlu0 %v289
    %v291 = vpop.xlane.xlu0 %290
    %v292 = vrcp.pop %v288
    %v293 = vrcp.pop %v291
    %v294 = vmul.f32 %v283, %v292
    %v295 = vmul.f32 %v285, %v293
    %v296 = vpack.c.bf16 %v294, %v294
    %v297 = vpack.c.bf16 %v295, %v295
    %298 = vrot.lane.b32.xlu0 %v114, 56
    %v299 = vpop.permute.xlu0 %298
    %v301 = vsel %vm117, %v296, 0
    %v304 = vsel %vm190, %v299, 0
    %306 = vmatpush.bf16.msra.mxu0 0
    %307 = vmatpush.bf16.msra.mxu0 0
    %308 = vmatpush.bf16.msra.mxu0 0
    %309 = vmatpush.bf16.msra.mxu0 0
    %310 = vmatpush.bf16.msra.mxu0 0
    %311 = vmatpush.bf16.msra.mxu0 0
    %312 = vmatpush.bf16.msra.mxu0 0
    %313 = vmatpush.bf16.msra.mxu0 %v304
    %314 = vmatmul.bf16.gmra.mxu0 %v301
    %v315 = vpop.f32.mrf.mxu0
    %v316 = vadd.f32 0.0, %v315
    %v317 = vpop.f32.mrf.mxu0
    %318 = vdwg.mxu0
    %319 = vrot.lane.b32.xlu0 %v139, 56
    %v320 = vpop.permute.xlu0 %319
    %v322 = vsel %vm117, %v297, 0
    %v325 = vsel %vm190, %v320, 0
    %327 = vmatpush.bf16.msra.mxu0 0
    %328 = vmatpush.bf16.msra.mxu0 0
    %329 = vmatpush.bf16.msra.mxu0 0
    %330 = vmatpush.bf16.msra.mxu0 0
    %331 = vmatpush.bf16.msra.mxu0 0
    %332 = vmatpush.bf16.msra.mxu0 0
    %333 = vmatpush.bf16.msra.mxu0 0
    %334 = vmatpush.bf16.msra.mxu0 %v325
    %335 = vmatmul.bf16.gmra.mxu0 %v322
    %v336 = vpop.f32.mrf.mxu0
    %v337 = vadd.f32 0.0, %v336
    %v338 = vpop.f32.mrf.mxu0
    %339 = vdwg.mxu0
    %340 = vrot.lane.b32.xlu0 %v114, 112
    %v341 = vpop.permute.xlu0 %340
    %342 = vrot.lane.b32.xlu0 %v114, 80
    %v343 = vpop.permute.xlu0 %342
    %v345 = vsel %vm117, %v341, 0
    %v348 = vsel %vm117, %v343, 0
    %350 = vmatpush.bf16.xpose.msra.mxu0 0
    %351 = vmatpush.bf16.xpose.msra.mxu0 0
    %352 = vmatpush.bf16.xpose.msra.mxu0 0
    %353 = vmatpush.bf16.xpose.msra.mxu0 0
    %354 = vmatpush.bf16.xpose.msra.mxu0 0
    %355 = vmatpush.bf16.xpose.msra.mxu0 0
    %356 = vmatpush.bf16.xpose.msra.mxu0 0
    %357 = vmatpush.bf16.xpose.msra.mxu0 %v348
    %358 = vmatmul.bf16.gmra.mxu0 %v345
    %v359 = vpop.f32.mrf.mxu0
    %v360 = vadd.f32 0.0, %v359
    %v361 = vpop.f32.mrf.mxu0
    %362 = vdwg.mxu0
    %363 = vrot.lane.b32.xlu0 %v139, 112
    %v364 = vpop.permute.xlu0 %363
    %365 = vrot.lane.b32.xlu0 %v139, 80
    %v366 = vpop.permute.xlu0 %365
    %v368 = vsel %vm117, %v364, 0
    %v371 = vsel %vm117, %v366, 0
    %373 = vmatpush.bf16.xpose.msra.mxu0 0
    %374 = vmatpush.bf16.xpose.msra.mxu0 0
    %375 = vmatpush.bf16.xpose.msra.mxu0 0
    %376 = vmatpush.bf16.xpose.msra.mxu0 0
    %377 = vmatpush.bf16.xpose.msra.mxu0 0
    %378 = vmatpush.bf16.xpose.msra.mxu0 0
    %379 = vmatpush.bf16.xpose.msra.mxu0 0
    %380 = vmatpush.bf16.xpose.msra.mxu0 %v371
    %381 = vmatmul.bf16.gmra.mxu0 %v368
    %v382 = vpop.f32.mrf.mxu0
    %v383 = vadd.f32 0.0, %v382
    %v384 = vpop.f32.mrf.mxu0
    %385 = vdwg.mxu0
    %v386 = vsel %vm117, %v360, -inf
    %387 = vmax.xlane.f32.xlu0 %v386
    %v388 = vpop.xlane.xlu0 %387
    %v389 = vsel %vm117, %v383, -inf
    %390 = vmax.xlane.f32.xlu0 %v389
    %v391 = vpop.xlane.xlu0 %390
    %v392 = vsub.f32 %v360, %v388
    %v393 = vsub.f32 %v383, %v391
    %v394 = vmul.f32 %v392, 1.442695
    %v395 = vpow.pop %v394
    %v396 = vmul.f32 %v393, 1.442695
    %v397 = vpow.pop %v396
    %v398 = vsel %vm117, %v395, 0.0
    %399 = vadd.xlane.f32.xlu0 %v398
    %v400 = vpop.xlane.xlu0 %399
    %v401 = vsel %vm117, %v397, 0.0
    %402 = vadd.xlane.f32.xlu0 %v401
    %v403 = vpop.xlane.xlu0 %402
    %v404 = vrcp.pop %v400
    %v405 = vrcp.pop %v403
    %v406 = vmul.f32 %v395, %v404
    %v407 = vmul.f32 %v397, %v405
    %v408 = vpack.c.bf16 %v406, %v406
    %v409 = vpack.c.bf16 %v407, %v407
    %410 = vrot.lane.b32.xlu0 %v114, 48
    %v411 = vpop.permute.xlu0 %410
    %v413 = vsel %vm117, %v408, 0
    %v416 = vsel %vm190, %v411, 0
    %418 = vmatpush.bf16.msra.mxu0 0
    %419 = vmatpush.bf16.msra.mxu0 0
    %420 = vmatpush.bf16.msra.mxu0 0
    %421 = vmatpush.bf16.msra.mxu0 0
    %422 = vmatpush.bf16.msra.mxu0 0
    %423 = vmatpush.bf16.msra.mxu0 0
    %424 = vmatpush.bf16.msra.mxu0 0
    %425 = vmatpush.bf16.msra.mxu0 %v416
    %426 = vmatmul.bf16.gmra.mxu0 %v413
    %v427 = vpop.f32.mrf.mxu0
    %v428 = vadd.f32 0.0, %v427
    %v429 = vpop.f32.mrf.mxu0
    %430 = vdwg.mxu0
    %431 = vrot.lane.b32.xlu0 %v139, 48
    %v432 = vpop.permute.xlu0 %431
    %v434 = vsel %vm117, %v409, 0
    %v437 = vsel %vm190, %v432, 0
    %439 = vmatpush.bf16.msra.mxu0 0
    %440 = vmatpush.bf16.msra.mxu0 0
    %441 = vmatpush.bf16.msra.mxu0 0
    %442 = vmatpush.bf16.msra.mxu0 0
    %443 = vmatpush.bf16.msra.mxu0 0
    %444 = vmatpush.bf16.msra.mxu0 0
    %445 = vmatpush.bf16.msra.mxu0 0
    %446 = vmatpush.bf16.msra.mxu0 %v437
    %447 = vmatmul.bf16.gmra.mxu0 %v434
    %v448 = vpop.f32.mrf.mxu0
    %v449 = vadd.f32 0.0, %v448
    %v450 = vpop.f32.mrf.mxu0
    %451 = vdwg.mxu0
    %452 = vrot.lane.b32.xlu0 %v114, 104
    %v453 = vpop.permute.xlu0 %452
    %454 = vrot.lane.b32.xlu0 %v114, 72
    %v455 = vpop.permute.xlu0 %454
    %v457 = vsel %vm117, %v453, 0
    %v460 = vsel %vm117, %v455, 0
    %462 = vmatpush.bf16.xpose.msra.mxu0 0
    %463 = vmatpush.bf16.xpose.msra.mxu0 0
    %464 = vmatpush.bf16.xpose.msra.mxu0 0
    %465 = vmatpush.bf16.xpose.msra.mxu0 0
    %466 = vmatpush.bf16.xpose.msra.mxu0 0
    %467 = vmatpush.bf16.xpose.msra.mxu0 0
    %468 = vmatpush.bf16.xpose.msra.mxu0 0
    %469 = vmatpush.bf16.xpose.msra.mxu0 %v460
    %470 = vmatmul.bf16.gmra.mxu0 %v457
    %v471 = vpop.f32.mrf.mxu0
    %v472 = vadd.f32 0.0, %v471
    %v473 = vpop.f32.mrf.mxu0
    %474 = vdwg.mxu0
    %475 = vrot.lane.b32.xlu0 %v139, 104
    %v476 = vpop.permute.xlu0 %475
    %477 = vrot.lane.b32.xlu0 %v139, 72
    %v478 = vpop.permute.xlu0 %477
    %v480 = vsel %vm117, %v476, 0
    %v483 = vsel %vm117, %v478, 0
    %485 = vmatpush.bf16.xpose.msra.mxu0 0
    %486 = vmatpush.bf16.xpose.msra.mxu0 0
    %487 = vmatpush.bf16.xpose.msra.mxu0 0
    %488 = vmatpush.bf16.xpose.msra.mxu0 0
    %489 = vmatpush.bf16.xpose.msra.mxu0 0
    %490 = vmatpush.bf16.xpose.msra.mxu0 0
    %491 = vmatpush.bf16.xpose.msra.mxu0 0
    %492 = vmatpush.bf16.xpose.msra.mxu0 %v483
    %493 = vmatmul.bf16.gmra.mxu0 %v480
    %v494 = vpop.f32.mrf.mxu0
    %v495 = vadd.f32 0.0, %v494
    %v496 = vpop.f32.mrf.mxu0
    %497 = vdwg.mxu0
    %v498 = vsel %vm117, %v472, -inf
    %499 = vmax.xlane.f32.xlu0 %v498
    %v500 = vpop.xlane.xlu0 %499
    %v501 = vsel %vm117, %v495, -inf
    %502 = vmax.xlane.f32.xlu0 %v501
    %v503 = vpop.xlane.xlu0 %502
    %v504 = vsub.f32 %v472, %v500
    %v505 = vsub.f32 %v495, %v503
    %v506 = vmul.f32 %v504, 1.442695
    %v507 = vpow.pop %v506
    %v508 = vmul.f32 %v505, 1.442695
    %v509 = vpow.pop %v508
    %v510 = vsel %vm117, %v507, 0.0
    %511 = vadd.xlane.f32.xlu0 %v510
    %v512 = vpop.xlane.xlu0 %511
    %v513 = vsel %vm117, %v509, 0.0
    %514 = vadd.xlane.f32.xlu0 %v513
    %v515 = vpop.xlane.xlu0 %514
    %v516 = vrcp.pop %v512
    %v517 = vrcp.pop %v515
    %v518 = vmul.f32 %v507, %v516
    %v519 = vmul.f32 %v509, %v517
    %v520 = vpack.c.bf16 %v518, %v518
    %v521 = vpack.c.bf16 %v519, %v519
    %522 = vrot.lane.b32.xlu0 %v114, 40
    %v523 = vpop.permute.xlu0 %522
    %v525 = vsel %vm117, %v520, 0
    %v528 = vsel %vm190, %v523, 0
    %530 = vmatpush.bf16.msra.mxu0 0
    %531 = vmatpush.bf16.msra.mxu0 0
    %532 = vmatpush.bf16.msra.mxu0 0
    %533 = vmatpush.bf16.msra.mxu0 0
    %534 = vmatpush.bf16.msra.mxu0 0
    %535 = vmatpush.bf16.msra.mxu0 0
    %536 = vmatpush.bf16.msra.mxu0 0
    %537 = vmatpush.bf16.msra.mxu0 %v528
    %538 = vmatmul.bf16.gmra.mxu0 %v525
    %v539 = vpop.f32.mrf.mxu0
    %v540 = vadd.f32 0.0, %v539
    %v541 = vpop.f32.mrf.mxu0
    %542 = vdwg.mxu0
    %543 = vrot.lane.b32.xlu0 %v139, 40
    %v544 = vpop.permute.xlu0 %543
    %v546 = vsel %vm117, %v521, 0
    %v549 = vsel %vm190, %v544, 0
    %551 = vmatpush.bf16.msra.mxu0 0
    %552 = vmatpush.bf16.msra.mxu0 0
    %553 = vmatpush.bf16.msra.mxu0 0
    %554 = vmatpush.bf16.msra.mxu0 0
    %555 = vmatpush.bf16.msra.mxu0 0
    %556 = vmatpush.bf16.msra.mxu0 0
    %557 = vmatpush.bf16.msra.mxu0 0
    %558 = vmatpush.bf16.msra.mxu0 %v549
    %559 = vmatmul.bf16.gmra.mxu0 %v546
    %v560 = vpop.f32.mrf.mxu0
    %v561 = vadd.f32 0.0, %v560
    %v562 = vpop.f32.mrf.mxu0
    %563 = vdwg.mxu0
    %566 = vrot.lane.b32.xlu0 %v316, 8
    %v567 = vpop.permute.xlu0 %566
    %568 = vrot.lane.b32.xlu0 %v337, 8
    %v569 = vpop.permute.xlu0 %568
    %574 = vrot.lane.b32.xlu0 %v428, 16
    %v575 = vpop.permute.xlu0 %574
    %576 = vrot.lane.b32.xlu0 %v449, 16
    %v577 = vpop.permute.xlu0 %576
    %582 = vrot.lane.b32.xlu0 %v540, 24
    %v583 = vpop.permute.xlu0 %582
    %584 = vrot.lane.b32.xlu0 %v561, 24
    %v585 = vpop.permute.xlu0 %584
    %v588 = vsel %vm117, %v204, %v567
    %v589 = vsel %vm117, %v225, %v569
    %vm590 = vcmask 130048
    %v591 = vsel %vm590, %v588, %v575
    %v592 = vsel %vm590, %v589, %v577
    %vm593 = vcmask 195584
    %v594 = vsel %vm593, %v591, %v583
    %v595 = vsel %vm593, %v592, %v585
    %v596 = vpack.c.bf16 %v595, %v594
    %v597 = vld [vmem:[#allocation7] sm:$0xf]
    %v598 = vld [vmem:[#allocation7 + $0x4] sm:$0xf]
    %v599 = vld [vmem:[#allocation7 + $0x8] sm:$0xf]
    %v600 = vld [vmem:[#allocation7 + $0xc] sm:$0xf]
    %v601 = vld [vmem:[%s4] sm:$0x1]
    %v603 = vperm.slane %v601, 0
    %v609 = vunpack.c.l.b16 %v597
    %v610 = vunpack.c.l.b16 %v598
    %v611 = vunpack.c.l.b16 %v599
    %v612 = vunpack.c.l.b16 %v600
    %v613 = vpack.c.b16 %v610, %v609
    %v614 = vpack.c.b16 %v612, %v611
    %v618 = vsel %vm92, %v596, 0
    %620 = vmatpush.bf16.msra.mxu0 0
    %621 = vmatpush.bf16.msra.mxu0 0
    %622 = vmatpush.bf16.msra.mxu0 0
    %623 = vmatpush.bf16.msra.mxu0 0
    %624 = vmatpush.bf16.msra.mxu0 0
    %625 = vmatpush.bf16.msra.mxu0 0
    %626 = vmatpush.bf16.msra.mxu0 %v614
    %627 = vmatpush.bf16.msra.mxu0 %v613
    %628 = vmatmul.bf16.gmra.mxu0 %v618
    %v629 = vpop.f32.mrf.mxu0
    %v630 = vadd.f32 %v603, %v629
    %v631 = vpop.f32.mrf.mxu0
    %v632 = vadd.f32 %v603, %v631
    %633 = vdwg.mxu0
    %v634 = vsel %vm92, %v69, 0.0
    %v635 = vsel %vm92, %v70, 0.0
    %v636 = vadd.f32 %v634, %v630
    %v637 = vadd.f32 %v635, %v632
    %638 = vst [vmem:[#allocation8] sm:$0xff] %v636
    %639 = vst [vmem:[#allocation8 + $0x8] sm:$0xff] %v637
    // Predicated region
    $region34: #{tpu_custom_call.1} parent=1 // pred_check
      _
    $region35: #{tpu_custom_call.1} parent=1 // pred_check_branch
      %641 = sbr.rel (0) target = $region37
    $region36: #{tpu_custom_call.1} parent=1 // pred_region
      %643 = vsyncadd [#allocation4], 0
      %s644 = sshll.u32 [#allocation8], 4
      %s645 = int_to_ptr.vmem [resolvable:$true] %s644
      %s646 = sshll.u32 %s5, 4
      %s647 = int_to_ptr.hbm [resolvable:$true] %s646
      %652 = dma.vmem_to_hbm [thread:$0]  %s645, 256, %s647, [#allocation4], 128, 128, 8
    $region37: #{tpu_custom_call.1} parent=1 // pred_fallthru
      _
    // Predicated region
    $region38: #{tpu_custom_call.1} parent=1 // pred_check
      _
    $region39: #{tpu_custom_call.1} parent=1 // pred_check_branch
      %654 = sbr.rel (0) target = $region41
    $region40: #{tpu_custom_call.1} parent=1 // pred_region
      %656 = dma.done [#allocation4], 256
    $region41: #{tpu_custom_call.1} parent=1 // pred_fallthru
      _
    %657 = vsyncpa [#allocation3], 1
    %658 = vsyncpa [#allocation6], 1
    %659 = vsyncpa [#allocation4], 1

</llo_original>
